<compile_context>
chip_gen: v7x
topology: tpu7x:2x2x1
jax: 0.10.0
libtpu: 0.0.40
codegen_flags: <defaults>
</compile_context>

<pallas_src>
import jax
import jax.numpy as jnp
from jax.experimental import pallas as pl
from jax.experimental.pallas import tpu as pltpu

INPUT_DIM = 256
H1, H2, H3 = 512, 256, 128
OUT_DIM = 5
OUT_PAD = 8        # padded output width; block last dim == full array dim (legal)
MAX_TM = 512       # max batch tile (rows); amortizes per-grid-step overhead


def _round_up(x, m):
    return ((x + m - 1) // m) * m


def _mlp_kernel(x_ref, w1_ref, b1_ref, w2_ref, b2_ref,
                w3_ref, b3_ref, w4_ref, b4_ref, o_ref):
    # bf16 matmul operands, f32 accumulation; bias-add / ReLU in f32 (VPU).
    x = x_ref[...].astype(jnp.bfloat16)   # no-op when caller already passes bf16
    h = jnp.dot(x, w1_ref[...], preferred_element_type=jnp.float32) + b1_ref[...]
    h = jnp.maximum(h, 0.0)
    # TODO(synk): Dropout(p=0.1) is identity in eval mode; training-mode RNG masking not emitted.
    h = jnp.dot(h.astype(jnp.bfloat16), w2_ref[...],
                preferred_element_type=jnp.float32) + b2_ref[...]
    h = jnp.maximum(h, 0.0)
    h = jnp.dot(h.astype(jnp.bfloat16), w3_ref[...],
                preferred_element_type=jnp.float32) + b3_ref[...]
    h = jnp.maximum(h, 0.0)
    o = jnp.dot(h.astype(jnp.bfloat16), w4_ref[...],
                preferred_element_type=jnp.float32) + b4_ref[...]
    o_ref[...] = o.astype(o_ref.dtype)


def prepare_params(params):
    """One-time (outside jit) param prep: bf16 weights, f32 (1,H) biases,
    last layer zero-padded to OUT_PAD lanes."""
    w1, b1, w2, b2, w3, b3, w4, b4 = params
    w4p = jnp.zeros((H3, OUT_PAD), jnp.float32).at[:, :OUT_DIM].set(w4)
    b4p = jnp.zeros((OUT_PAD,), jnp.float32).at[:OUT_DIM].set(b4)
    return (
        w1.astype(jnp.bfloat16), jnp.reshape(b1, (1, H1)).astype(jnp.float32),
        w2.astype(jnp.bfloat16), jnp.reshape(b2, (1, H2)).astype(jnp.float32),
        w3.astype(jnp.bfloat16), jnp.reshape(b3, (1, H3)).astype(jnp.float32),
        w4p.astype(jnp.bfloat16), jnp.reshape(b4p, (1, OUT_PAD)).astype(jnp.float32),
    )


@jax.jit
def coordinate_generator_forward(features, prepared_params):
    """features: (B, 256) float32 or bfloat16 -> (B, 5) float32."""
    w1, b1, w2, b2, w3, b3, w4p, b4p = prepared_params
    B = features.shape[0]

    # Batch tile: large tiles amortize per-step overhead; no wrapper padding —
    # Pallas masks the partial boundary tile and garbage rows are discarded by
    # the column slice below (rows are fully independent).
    tm = min(MAX_TM, _round_up(B, 8))
    grid = (pl.cdiv(B, tm),)

    def bcast_spec(shape):
        # full (un-tiled) weight / bias block, identical for every grid step
        return pl.BlockSpec(shape, lambda i, _shape=shape: tuple(0 for _ in _shape))

    out = pl.pallas_call(
        _mlp_kernel,
        out_shape=jax.ShapeDtypeStruct((B, OUT_PAD), jnp.float32),
        grid_spec=pltpu.PrefetchScalarGridSpec(
            num_scalar_prefetch=0,
            grid=grid,
            in_specs=[
                pl.BlockSpec((tm, INPUT_DIM), lambda i: (i, 0)),   # x tile
                bcast_spec((INPUT_DIM, H1)),                       # w1 (bf16)
                bcast_spec((1, H1)),                               # b1 (f32)
                bcast_spec((H1, H2)),                              # w2 (bf16)
                bcast_spec((1, H2)),                               # b2 (f32)
                bcast_spec((H2, H3)),                              # w3 (bf16)
                bcast_spec((1, H3)),                               # b3 (f32)
                bcast_spec((H3, OUT_PAD)),                         # w4 (bf16, padded)
                bcast_spec((1, OUT_PAD)),                          # b4 (f32, padded)
            ],
            out_specs=pl.BlockSpec((tm, OUT_PAD), lambda i: (i, 0)),
        ),
        compiler_params=pltpu.CompilerParams(
            dimension_semantics=("parallel",),
            # Resident buffers: bf16 weights ~0.6 MiB + double-buffered
            # (512,256) f32 x tiles ~1 MiB + small out/bias tiles -> ~2 MiB.
            vmem_limit_bytes=16 * 1024 * 1024,
        ),
    )(features, w1, b1, w2, b2, w3, b3, w4p, b4p)

    return out[:, :OUT_DIM]


def init_params(key):
    """PyTorch Linear default init: U(-1/sqrt(fan_in), 1/sqrt(fan_in))."""
    dims = [(INPUT_DIM, H1), (H1, H2), (H2, H3), (H3, OUT_DIM)]
    params = []
    for idx, (fin, fout) in enumerate(dims):
        kw, kb = jax.random.split(jax.random.fold_in(key, idx))
        bound = 1.0 / jnp.sqrt(fin)
        w = jax.random.uniform(kw, (fin, fout), jnp.float32, -bound, bound)
        b = jax.random.uniform(kb, (fout,), jnp.float32, -bound, bound)
        params += [w, b]
    return tuple(params)


def reference_forward(features, params):
    """Pure-JAX f32 reference of the PyTorch module in eval mode."""
    w1, b1, w2, b2, w3, b3, w4, b4 = params
    h = jax.nn.relu(features @ w1 + b1)
    h = jax.nn.relu(h @ w2 + b2)
    h = jax.nn.relu(h @ w3 + b3)
    return h @ w4 + b4


if __name__ == "__main__":
    key = jax.random.PRNGKey(0)
    k_x, k_p = jax.random.split(key)

    B = 8  # small batch; kernel picks a tight 8-row tile (no padding pass)
    features = jax.random.normal(k_x, (B, INPUT_DIM), jnp.float32)
    params = init_params(k_p)
    prepared = prepare_params(params)   # hoisted: bf16 cast + w4/b4 padding

    out = coordinate_generator_forward(features, prepared)
    out = jax.block_until_ready(out)

    ref = reference_forward(features, params)
    assert out.shape == (B, OUT_DIM), out.shape
    max_err = float(jnp.max(jnp.abs(out - ref)))
    # bf16 matmul operands with f32 accumulation -> loosened tolerance
    assert jnp.allclose(out, ref, atol=5e-2, rtol=5e-2), max_err

    print("KERNEL_OK")
</pallas_src>

<mosaic_0001>
module attributes {stable_mosaic.version = 11 : i64} {
  func.func @_mlp_kernel(%arg0: i32, %arg1: memref<8x256xf32, #tpu.memory_space<vmem>>, %arg2: memref<256x512xbf16, #tpu.memory_space<vmem>>, %arg3: memref<1x512xf32, #tpu.memory_space<vmem>>, %arg4: memref<512x256xbf16, #tpu.memory_space<vmem>>, %arg5: memref<1x256xf32, #tpu.memory_space<vmem>>, %arg6: memref<256x128xbf16, #tpu.memory_space<vmem>>, %arg7: memref<1x128xf32, #tpu.memory_space<vmem>>, %arg8: memref<128x8xbf16, #tpu.memory_space<vmem>>, %arg9: memref<1x8xf32, #tpu.memory_space<vmem>>, %arg10: memref<8x8xf32, #tpu.memory_space<vmem>>) attributes {dimension_semantics = [#tpu.dimension_semantics<parallel>], iteration_bounds = array<i64: 1>, scalar_prefetch = 0 : i64, scratch_operands = 0 : i64, tpu.core_type = #tpu.core_type<tc>, window_params = [{transform_indices = @transform_0, window_bounds = array<i64: 8, 256>}, {pipeline_mode = #tpu.pipeline_mode<synchronous>, transform_indices = @transform_1, window_bounds = array<i64: 256, 512>}, {pipeline_mode = #tpu.pipeline_mode<synchronous>, transform_indices = @transform_2, window_bounds = array<i64: 1, 512>}, {pipeline_mode = #tpu.pipeline_mode<synchronous>, transform_indices = @transform_3, window_bounds = array<i64: 512, 256>}, {pipeline_mode = #tpu.pipeline_mode<synchronous>, transform_indices = @transform_4, window_bounds = array<i64: 1, 256>}, {pipeline_mode = #tpu.pipeline_mode<synchronous>, transform_indices = @transform_5, window_bounds = array<i64: 256, 128>}, {pipeline_mode = #tpu.pipeline_mode<synchronous>, transform_indices = @transform_6, window_bounds = array<i64: 1, 128>}, {pipeline_mode = #tpu.pipeline_mode<synchronous>, transform_indices = @transform_7, window_bounds = array<i64: 128, 8>}, {pipeline_mode = #tpu.pipeline_mode<synchronous>, transform_indices = @transform_8, window_bounds = array<i64: 1, 8>}, {transform_indices = @transform_9, window_bounds = array<i64: 8, 8>}]} {
    %c0 = arith.constant 0 : index
    %c0_0 = arith.constant 0 : index
    %0 = vector.load %arg1[%c0, %c0_0] : memref<8x256xf32, #tpu.memory_space<vmem>>, vector<8x256xf32>
    %1 = arith.truncf %0 : vector<8x256xf32> to vector<8x256xbf16>
    %c0_1 = arith.constant 0 : index
    %c0_2 = arith.constant 0 : index
    %2 = vector.load %arg2[%c0_1, %c0_2] : memref<256x512xbf16, #tpu.memory_space<vmem>>, vector<256x512xbf16>
    %cst = arith.constant dense<0.000000e+00> : vector<8x512xf32>
    %3 = tpu.matmul %1, %2, %cst {dimension_numbers = #tpu.dot_dimension_numbers<[1], [0], [0], [1], [0, 0, 1, 1], [], []>} : vector<8x256xbf16>, vector<256x512xbf16>, vector<8x512xf32> -> vector<8x512xf32>
    %c0_3 = arith.constant 0 : index
    %c0_4 = arith.constant 0 : index
    %4 = vector.load %arg3[%c0_3, %c0_4] : memref<1x512xf32, #tpu.memory_space<vmem>>, vector<1x512xf32>
    %5 = vector.broadcast %4 : vector<1x512xf32> to vector<8x512xf32>
    %6 = arith.addf %3, %5 : vector<8x512xf32>
    %cst_5 = arith.constant 0.000000e+00 : f32
    %7 = vector.broadcast %cst_5 : f32 to vector<8x512xf32>
    %8 = arith.maximumf %6, %7 : vector<8x512xf32>
    %9 = arith.truncf %8 : vector<8x512xf32> to vector<8x512xbf16>
    %c0_6 = arith.constant 0 : index
    %c0_7 = arith.constant 0 : index
    %10 = vector.load %arg4[%c0_6, %c0_7] : memref<512x256xbf16, #tpu.memory_space<vmem>>, vector<512x256xbf16>
    %cst_8 = arith.constant dense<0.000000e+00> : vector<8x256xf32>
    %11 = tpu.matmul %9, %10, %cst_8 {dimension_numbers = #tpu.dot_dimension_numbers<[1], [0], [0], [1], [0, 0, 1, 1], [], []>} : vector<8x512xbf16>, vector<512x256xbf16>, vector<8x256xf32> -> vector<8x256xf32>
    %c0_9 = arith.constant 0 : index
    %c0_10 = arith.constant 0 : index
    %12 = vector.load %arg5[%c0_9, %c0_10] : memref<1x256xf32, #tpu.memory_space<vmem>>, vector<1x256xf32>
    %13 = vector.broadcast %12 : vector<1x256xf32> to vector<8x256xf32>
    %14 = arith.addf %11, %13 : vector<8x256xf32>
    %cst_11 = arith.constant 0.000000e+00 : f32
    %15 = vector.broadcast %cst_11 : f32 to vector<8x256xf32>
    %16 = arith.maximumf %14, %15 : vector<8x256xf32>
    %17 = arith.truncf %16 : vector<8x256xf32> to vector<8x256xbf16>
    %c0_12 = arith.constant 0 : index
    %c0_13 = arith.constant 0 : index
    %18 = vector.load %arg6[%c0_12, %c0_13] : memref<256x128xbf16, #tpu.memory_space<vmem>>, vector<256x128xbf16>
    %cst_14 = arith.constant dense<0.000000e+00> : vector<8x128xf32>
    %19 = tpu.matmul %17, %18, %cst_14 {dimension_numbers = #tpu.dot_dimension_numbers<[1], [0], [0], [1], [0, 0, 1, 1], [], []>} : vector<8x256xbf16>, vector<256x128xbf16>, vector<8x128xf32> -> vector<8x128xf32>
    %c0_15 = arith.constant 0 : index
    %c0_16 = arith.constant 0 : index
    %20 = vector.load %arg7[%c0_15, %c0_16] : memref<1x128xf32, #tpu.memory_space<vmem>>, vector<1x128xf32>
    %21 = vector.broadcast %20 : vector<1x128xf32> to vector<8x128xf32>
    %22 = arith.addf %19, %21 : vector<8x128xf32>
    %cst_17 = arith.constant 0.000000e+00 : f32
    %23 = vector.broadcast %cst_17 : f32 to vector<8x128xf32>
    %24 = arith.maximumf %22, %23 : vector<8x128xf32>
    %25 = arith.truncf %24 : vector<8x128xf32> to vector<8x128xbf16>
    %c0_18 = arith.constant 0 : index
    %c0_19 = arith.constant 0 : index
    %26 = vector.load %arg8[%c0_18, %c0_19] : memref<128x8xbf16, #tpu.memory_space<vmem>>, vector<128x8xbf16>
    %cst_20 = arith.constant dense<0.000000e+00> : vector<8x8xf32>
    %27 = tpu.matmul %25, %26, %cst_20 {dimension_numbers = #tpu.dot_dimension_numbers<[1], [0], [0], [1], [0, 0, 1, 1], [], []>} : vector<8x128xbf16>, vector<128x8xbf16>, vector<8x8xf32> -> vector<8x8xf32>
    %c0_21 = arith.constant 0 : index
    %c0_22 = arith.constant 0 : index
    %28 = vector.load %arg9[%c0_21, %c0_22] : memref<1x8xf32, #tpu.memory_space<vmem>>, vector<1x8xf32>
    %29 = vector.broadcast %28 : vector<1x8xf32> to vector<8x8xf32>
    %30 = arith.addf %27, %29 : vector<8x8xf32>
    %c0_23 = arith.constant 0 : index
    %c0_24 = arith.constant 0 : index
    %31 = vector.load %arg10[%c0_23, %c0_24] : memref<8x8xf32, #tpu.memory_space<vmem>>, vector<8x8xf32>
    tpu.vector_store %arg10[%c0_23, %c0_24], %30 {strides = array<i32>} : memref<8x8xf32, #tpu.memory_space<vmem>>, vector<8x8xf32>,
    return
  }
  func.func @transform_0(%arg0: i32) -> (i32, i32) {
    %c0_i32 = arith.constant 0 : i32
    %c0_i32_0 = arith.constant 0 : i32
    return %arg0, %c0_i32 : i32, i32
  }
  func.func @transform_1(%arg0: i32) -> (i32, i32) {
    %c0_i32 = arith.constant 0 : i32
    %c0_i32_0 = arith.constant 0 : i32
    %c0_i32_1 = arith.constant 0 : i32
    return %c0_i32, %c0_i32_0 : i32, i32
  }
  func.func @transform_2(%arg0: i32) -> (i32, i32) {
    %c0_i32 = arith.constant 0 : i32
    %c0_i32_0 = arith.constant 0 : i32
    %c0_i32_1 = arith.constant 0 : i32
    return %c0_i32, %c0_i32_0 : i32, i32
  }
  func.func @transform_3(%arg0: i32) -> (i32, i32) {
    %c0_i32 = arith.constant 0 : i32
    %c0_i32_0 = arith.constant 0 : i32
    %c0_i32_1 = arith.constant 0 : i32
    return %c0_i32, %c0_i32_0 : i32, i32
  }
  func.func @transform_4(%arg0: i32) -> (i32, i32) {
    %c0_i32 = arith.constant 0 : i32
    %c0_i32_0 = arith.constant 0 : i32
    %c0_i32_1 = arith.constant 0 : i32
    return %c0_i32, %c0_i32_0 : i32, i32
  }
  func.func @transform_5(%arg0: i32) -> (i32, i32) {
    %c0_i32 = arith.constant 0 : i32
    %c0_i32_0 = arith.constant 0 : i32
    %c0_i32_1 = arith.constant 0 : i32
    return %c0_i32, %c0_i32_0 : i32, i32
  }
  func.func @transform_6(%arg0: i32) -> (i32, i32) {
    %c0_i32 = arith.constant 0 : i32
    %c0_i32_0 = arith.constant 0 : i32
    %c0_i32_1 = arith.constant 0 : i32
    return %c0_i32, %c0_i32_0 : i32, i32
  }
  func.func @transform_7(%arg0: i32) -> (i32, i32) {
    %c0_i32 = arith.constant 0 : i32
    %c0_i32_0 = arith.constant 0 : i32
    %c0_i32_1 = arith.constant 0 : i32
    return %c0_i32, %c0_i32_0 : i32, i32
  }
  func.func @transform_8(%arg0: i32) -> (i32, i32) {
    %c0_i32 = arith.constant 0 : i32
    %c0_i32_0 = arith.constant 0 : i32
    %c0_i32_1 = arith.constant 0 : i32
    return %c0_i32, %c0_i32_0 : i32, i32
  }
  func.func @transform_9(%arg0: i32) -> (i32, i32) {
    %c0_i32 = arith.constant 0 : i32
    %c0_i32_0 = arith.constant 0 : i32
    return %arg0, %c0_i32 : i32, i32
  }
}

</mosaic_0001>

<llo_original>
// kernel: coordinate_generator_forward.1
$region0: #{coordinate_generator_forward.1}
  #allocation0 [shape = 'u32[]', space=smem, size = 0x4, offset = 0x4, fixed_abs, tag = 'smem constant byte address 0x4 - core index']
  #allocation1 [shape = 'u32[144,128]{1,0:T(1,128)}', space=vmem, size = 0x12000, scoped, tag = 'internal scratch']
  %s0 = inlined_call_operand.vmem [shape: f32[8,256], index: 0, kind: input, shape index: {}]
  %s1 = inlined_call_operand.hbm [shape: bf16[256,512], index: 1, kind: input, shape index: {}]
  %s2 = inlined_call_operand.vmem [shape: f32[1,512], index: 2, kind: input, shape index: {}]
  %s3 = inlined_call_operand.hbm [shape: bf16[512,256], index: 3, kind: input, shape index: {}]
  %s4 = inlined_call_operand.vmem [shape: f32[1,256], index: 4, kind: input, shape index: {}]
  %s5 = inlined_call_operand.hbm [shape: bf16[256,128], index: 5, kind: input, shape index: {}]
  %s6 = inlined_call_operand.vmem [shape: f32[1,128], index: 6, kind: input, shape index: {}]
  %s7 = inlined_call_operand.vmem [shape: bf16[128,8], index: 7, kind: input, shape index: {}]
  %s8 = inlined_call_operand.vmem [shape: f32[1,8], index: 8, kind: input, shape index: {}]
  %s9 = inlined_call_operand.hbm [shape: f32[8,8], index: 9, kind: output, shape index: {}]
  %s10 = sld [smem:[#allocation0]]
  $region58: #{coordinate_generator_forward.1} parent=0
    _
  %s12 = ssub.s32 1, %s10
  %s13 = scalar_select 0, %s12, %s10
  $region1: #{coordinate_generator_forward.1} parent=0
    #allocation2 [shape = 'u8[262144]{0}', space=vmem, size = 0x40000, scoped, tag = 'input window, operand 1, single buffered']
    #allocation3 [shape = 's32[1]{0}', space=sflag, size = 0x4, scoped, tag = 'scoped memory for coordinate_generator_forward.1']
    #allocation4 [shape = 's32[1]{0}', space=sflag, size = 0x4, scoped, tag = 'scoped memory for coordinate_generator_forward.1']
    #allocation5 [shape = 'u8[262144]{0}', space=vmem, size = 0x40000, scoped, tag = 'input window, operand 3, single buffered']
    #allocation6 [shape = 's32[1]{0}', space=sflag, size = 0x4, scoped, tag = 'scoped memory for coordinate_generator_forward.1']
    #allocation7 [shape = 'u8[65536]{0}', space=vmem, size = 0x10000, scoped, tag = 'input window, operand 5, single buffered']
    #allocation8 [shape = 'u8[4096]{0}', space=vmem, size = 0x1000, scoped, tag = 'output window, operand 0, single buffered']
    %14 = vsyncpa [#allocation3], 0
    %15 = vsyncpa [#allocation6], 0
    %16 = vsyncpa [#allocation4], 0
    // Predicated region
    $region2: #{coordinate_generator_forward.1} parent=1 // pred_check
      _
    $region3: #{coordinate_generator_forward.1} parent=1 // pred_check_branch
      %18 = sbr.rel (0) target = $region5
    $region4: #{coordinate_generator_forward.1} parent=1 // pred_region
      _
    $region5: #{coordinate_generator_forward.1} parent=1 // pred_fallthru
      _
    // Predicated region
    $region6: #{coordinate_generator_forward.1} parent=1 // pred_check
      _
    $region7: #{coordinate_generator_forward.1} parent=1 // pred_check_branch
      %20 = sbr.rel (0) target = $region9
    $region8: #{coordinate_generator_forward.1} parent=1 // pred_region
      %s22 = ssub.s32 8192, 8192
      %23 = vsyncadd [#allocation3], %s22
      %s24 = sshll.u32 [#allocation2], 4
      %s25 = int_to_ptr.vmem [resolvable:$true] %s24
      %30 = dma.hbm_to_vmem [thread:$0]  %s1, 8192, %s25, [#allocation3], 256, 256, 16
    $region9: #{coordinate_generator_forward.1} parent=1 // pred_fallthru
      _
    // Predicated region
    $region10: #{coordinate_generator_forward.1} parent=1 // pred_check
      _
    $region11: #{coordinate_generator_forward.1} parent=1 // pred_check_branch
      %32 = sbr.rel (0) target = $region13
    $region12: #{coordinate_generator_forward.1} parent=1 // pred_region
      _
    $region13: #{coordinate_generator_forward.1} parent=1 // pred_fallthru
      _
    // Predicated region
    $region14: #{coordinate_generator_forward.1} parent=1 // pred_check
      _
    $region15: #{coordinate_generator_forward.1} parent=1 // pred_check_branch
      %34 = sbr.rel (0) target = $region17
    $region16: #{coordinate_generator_forward.1} parent=1 // pred_region
      %s36 = ssub.s32 8192, 8192
      %37 = vsyncadd [#allocation6], %s36
      %s38 = sshll.u32 [#allocation5], 4
      %s39 = int_to_ptr.vmem [resolvable:$true] %s38
      %44 = dma.hbm_to_vmem [thread:$0]  %s3, 8192, %s39, [#allocation6], 128, 128, 8
    $region17: #{coordinate_generator_forward.1} parent=1 // pred_fallthru
      _
    // Predicated region
    $region18: #{coordinate_generator_forward.1} parent=1 // pred_check
      _
    $region19: #{coordinate_generator_forward.1} parent=1 // pred_check_branch
      %46 = sbr.rel (0) target = $region21
    $region20: #{coordinate_generator_forward.1} parent=1 // pred_region
      _
    $region21: #{coordinate_generator_forward.1} parent=1 // pred_fallthru
      _
    // Predicated region
    $region22: #{coordinate_generator_forward.1} parent=1 // pred_check
      _
    $region23: #{coordinate_generator_forward.1} parent=1 // pred_check_branch
      %48 = sbr.rel (0) target = $region25
    $region24: #{coordinate_generator_forward.1} parent=1 // pred_region
      %s50 = ssub.s32 2048, 2048
      %51 = vsyncadd [#allocation6], %s50
      %s52 = sshll.u32 [#allocation7], 4
      %s53 = int_to_ptr.vmem [resolvable:$true] %s52
      %58 = dma.hbm_to_vmem [thread:$0]  %s5, 2048, %s53, [#allocation6], 64, 64, 4
    $region25: #{coordinate_generator_forward.1} parent=1 // pred_fallthru
      _
    // Predicated region
    $region26: #{coordinate_generator_forward.1} parent=1 // pred_check
      _
    $region27: #{coordinate_generator_forward.1} parent=1 // pred_check_branch
      %60 = sbr.rel (0) target = $region29
    $region28: #{coordinate_generator_forward.1} parent=1 // pred_region
      _
    $region29: #{coordinate_generator_forward.1} parent=1 // pred_fallthru
      _
    // Predicated region
    $region30: #{coordinate_generator_forward.1} parent=1 // pred_check
      _
    $region31: #{coordinate_generator_forward.1} parent=1 // pred_check_branch
      %62 = sbr.rel (0) target = $region33
    $region32: #{coordinate_generator_forward.1} parent=1 // pred_region
      _
    $region33: #{coordinate_generator_forward.1} parent=1 // pred_fallthru
      _
    // Predicated region
    $region34: #{coordinate_generator_forward.1} parent=1 // pred_check
      _
    $region35: #{coordinate_generator_forward.1} parent=1 // pred_check_branch
      %64 = sbr.rel (0) target = $region37
    $region36: #{coordinate_generator_forward.1} parent=1 // pred_region
      _
    $region37: #{coordinate_generator_forward.1} parent=1 // pred_fallthru
      _
    // Predicated region
    $region38: #{coordinate_generator_forward.1} parent=1 // pred_check
      _
    $region39: #{coordinate_generator_forward.1} parent=1 // pred_check_branch
      %66 = sbr.rel (0) target = $region41
    $region40: #{coordinate_generator_forward.1} parent=1 // pred_region
      %67 = dma.done [#allocation3], 8192
    $region41: #{coordinate_generator_forward.1} parent=1 // pred_fallthru
      _
    // Predicated region
    $region42: #{coordinate_generator_forward.1} parent=1 // pred_check
      _
    $region43: #{coordinate_generator_forward.1} parent=1 // pred_check_branch
      %69 = sbr.rel (0) target = $region45
    $region44: #{coordinate_generator_forward.1} parent=1 // pred_region
      %70 = dma.done [#allocation6], 8192
    $region45: #{coordinate_generator_forward.1} parent=1 // pred_fallthru
      _
    // Predicated region
    $region46: #{coordinate_generator_forward.1} parent=1 // pred_check
      _
    $region47: #{coordinate_generator_forward.1} parent=1 // pred_check_branch
      %72 = sbr.rel (0) target = $region49
    $region48: #{coordinate_generator_forward.1} parent=1 // pred_region
      %73 = dma.done [#allocation6], 2048
    $region49: #{coordinate_generator_forward.1} parent=1 // pred_fallthru
      _
    %v75 = vld [vmem:[%s0] sm:$0xff]
    %v76 = vld [vmem:[%s0 + $0x8] sm:$0xff]
    %v77 = vpack.c.bf16 %v75, %v75
    %v78 = vpack.c.bf16 %v76, %v76
    %v79 = vld [vmem:[#allocation2] sm:$0xff]
    %v80 = vld [vmem:[#allocation2 + $0x8] sm:$0xff]
    %v81 = vld [vmem:[#allocation2 + $0x10] sm:$0xff]
    %v82 = vld [vmem:[#allocation2 + $0x18] sm:$0xff]
    %v83 = vld [vmem:[#allocation2 + $0x20] sm:$0xff]
    %v84 = vld [vmem:[#allocation2 + $0x28] sm:$0xff]
    %v85 = vld [vmem:[#allocation2 + $0x30] sm:$0xff]
    %v86 = vld [vmem:[#allocation2 + $0x38] sm:$0xff]
    %v87 = vld [vmem:[#allocation2 + $0x40] sm:$0xff]
    %v88 = vld [vmem:[#allocation2 + $0x48] sm:$0xff]
    %v89 = vld [vmem:[#allocation2 + $0x50] sm:$0xff]
    %v90 = vld [vmem:[#allocation2 + $0x58] sm:$0xff]
    %v91 = vld [vmem:[#allocation2 + $0x60] sm:$0xff]
    %v92 = vld [vmem:[#allocation2 + $0x68] sm:$0xff]
    %v93 = vld [vmem:[#allocation2 + $0x70] sm:$0xff]
    %v94 = vld [vmem:[#allocation2 + $0x78] sm:$0xff]
    %v95 = vld [vmem:[#allocation2 + $0x80] sm:$0xff]
    %v96 = vld [vmem:[#allocation2 + $0x88] sm:$0xff]
    %v97 = vld [vmem:[#allocation2 + $0x90] sm:$0xff]
    %v98 = vld [vmem:[#allocation2 + $0x98] sm:$0xff]
    %v99 = vld [vmem:[#allocation2 + $0xa0] sm:$0xff]
    %v100 = vld [vmem:[#allocation2 + $0xa8] sm:$0xff]
    %v101 = vld [vmem:[#allocation2 + $0xb0] sm:$0xff]
    %v102 = vld [vmem:[#allocation2 + $0xb8] sm:$0xff]
    %v103 = vld [vmem:[#allocation2 + $0xc0] sm:$0xff]
    %v104 = vld [vmem:[#allocation2 + $0xc8] sm:$0xff]
    %v105 = vld [vmem:[#allocation2 + $0xd0] sm:$0xff]
    %v106 = vld [vmem:[#allocation2 + $0xd8] sm:$0xff]
    %v107 = vld [vmem:[#allocation2 + $0xe0] sm:$0xff]
    %v108 = vld [vmem:[#allocation2 + $0xe8] sm:$0xff]
    %v109 = vld [vmem:[#allocation2 + $0xf0] sm:$0xff]
    %v110 = vld [vmem:[#allocation2 + $0xf8] sm:$0xff]
    %v111 = vld [vmem:[#allocation2 + $0x100] sm:$0xff]
    %v112 = vld [vmem:[#allocation2 + $0x108] sm:$0xff]
    %v113 = vld [vmem:[#allocation2 + $0x110] sm:$0xff]
    %v114 = vld [vmem:[#allocation2 + $0x118] sm:$0xff]
    %v115 = vld [vmem:[#allocation2 + $0x120] sm:$0xff]
    %v116 = vld [vmem:[#allocation2 + $0x128] sm:$0xff]
    %v117 = vld [vmem:[#allocation2 + $0x130] sm:$0xff]
    %v118 = vld [vmem:[#allocation2 + $0x138] sm:$0xff]
    %v119 = vld [vmem:[#allocation2 + $0x140] sm:$0xff]
    %v120 = vld [vmem:[#allocation2 + $0x148] sm:$0xff]
    %v121 = vld [vmem:[#allocation2 + $0x150] sm:$0xff]
    %v122 = vld [vmem:[#allocation2 + $0x158] sm:$0xff]
    %v123 = vld [vmem:[#allocation2 + $0x160] sm:$0xff]
    %v124 = vld [vmem:[#allocation2 + $0x168] sm:$0xff]
    %v125 = vld [vmem:[#allocation2 + $0x170] sm:$0xff]
    %v126 = vld [vmem:[#allocation2 + $0x178] sm:$0xff]
    %v127 = vld [vmem:[#allocation2 + $0x180] sm:$0xff]
    %v128 = vld [vmem:[#allocation2 + $0x188] sm:$0xff]
    %v129 = vld [vmem:[#allocation2 + $0x190] sm:$0xff]
    %v130 = vld [vmem:[#allocation2 + $0x198] sm:$0xff]
    %v131 = vld [vmem:[#allocation2 + $0x1a0] sm:$0xff]
    %v132 = vld [vmem:[#allocation2 + $0x1a8] sm:$0xff]
    %v133 = vld [vmem:[#allocation2 + $0x1b0] sm:$0xff]
    %v134 = vld [vmem:[#allocation2 + $0x1b8] sm:$0xff]
    %v135 = vld [vmem:[#allocation2 + $0x1c0] sm:$0xff]
    %v136 = vld [vmem:[#allocation2 + $0x1c8] sm:$0xff]
    %v137 = vld [vmem:[#allocation2 + $0x1d0] sm:$0xff]
    %v138 = vld [vmem:[#allocation2 + $0x1d8] sm:$0xff]
    %v139 = vld [vmem:[#allocation2 + $0x1e0] sm:$0xff]
    %v140 = vld [vmem:[#allocation2 + $0x1e8] sm:$0xff]
    %v141 = vld [vmem:[#allocation2 + $0x1f0] sm:$0xff]
    %v142 = vld [vmem:[#allocation2 + $0x1f8] sm:$0xff]
    %v143 = vld [vmem:[%s2] sm:$0xf]
    %v145 = vlaneseq
    %v146 = vshrl.u32 %v145, 7
    %v147 = vsub.s32 0, %v146
    %v148 = vrot.slane %v143, %v147
    %v149 = vlaneseq
    %v150 = vshrl.u32 %v149, 7
    %v151 = vsub.s32 1, %v150
    %v152 = vrot.slane %v143, %v151
    %v153 = vlaneseq
    %v154 = vshrl.u32 %v153, 7
    %v155 = vsub.s32 2, %v154
    %v156 = vrot.slane %v143, %v155
    %v157 = vlaneseq
    %v158 = vshrl.u32 %v157, 7
    %v159 = vsub.s32 3, %v158
    %v160 = vrot.slane %v143, %v159
    %v229 = vunpack.c.l.b16 %v79
    %v230 = vunpack.c.h.b16 %v79
    %v231 = vunpack.c.l.b16 %v80
    %v232 = vunpack.c.h.b16 %v80
    %v233 = vunpack.c.l.b16 %v81
    %v234 = vunpack.c.h.b16 %v81
    %v235 = vunpack.c.l.b16 %v82
    %v236 = vunpack.c.h.b16 %v82
    %v237 = vunpack.c.l.b16 %v83
    %v238 = vunpack.c.h.b16 %v83
    %v239 = vunpack.c.l.b16 %v84
    %v240 = vunpack.c.h.b16 %v84
    %v241 = vunpack.c.l.b16 %v85
    %v242 = vunpack.c.h.b16 %v85
    %v243 = vunpack.c.l.b16 %v86
    %v244 = vunpack.c.h.b16 %v86
    %v245 = vunpack.c.l.b16 %v87
    %v246 = vunpack.c.h.b16 %v87
    %v247 = vunpack.c.l.b16 %v88
    %v248 = vunpack.c.h.b16 %v88
    %v249 = vunpack.c.l.b16 %v89
    %v250 = vunpack.c.h.b16 %v89
    %v251 = vunpack.c.l.b16 %v90
    %v252 = vunpack.c.h.b16 %v90
    %v253 = vunpack.c.l.b16 %v91
    %v254 = vunpack.c.h.b16 %v91
    %v255 = vunpack.c.l.b16 %v92
    %v256 = vunpack.c.h.b16 %v92
    %v257 = vunpack.c.l.b16 %v93
    %v258 = vunpack.c.h.b16 %v93
    %v259 = vunpack.c.l.b16 %v94
    %v260 = vunpack.c.h.b16 %v94
    %v261 = vunpack.c.l.b16 %v95
    %v262 = vunpack.c.h.b16 %v95
    %v263 = vunpack.c.l.b16 %v96
    %v264 = vunpack.c.h.b16 %v96
    %v265 = vunpack.c.l.b16 %v97
    %v266 = vunpack.c.h.b16 %v97
    %v267 = vunpack.c.l.b16 %v98
    %v268 = vunpack.c.h.b16 %v98
    %v269 = vunpack.c.l.b16 %v99
    %v270 = vunpack.c.h.b16 %v99
    %v271 = vunpack.c.l.b16 %v100
    %v272 = vunpack.c.h.b16 %v100
    %v273 = vunpack.c.l.b16 %v101
    %v274 = vunpack.c.h.b16 %v101
    %v275 = vunpack.c.l.b16 %v102
    %v276 = vunpack.c.h.b16 %v102
    %v277 = vunpack.c.l.b16 %v103
    %v278 = vunpack.c.h.b16 %v103
    %v279 = vunpack.c.l.b16 %v104
    %v280 = vunpack.c.h.b16 %v104
    %v281 = vunpack.c.l.b16 %v105
    %v282 = vunpack.c.h.b16 %v105
    %v283 = vunpack.c.l.b16 %v106
    %v284 = vunpack.c.h.b16 %v106
    %v285 = vunpack.c.l.b16 %v107
    %v286 = vunpack.c.h.b16 %v107
    %v287 = vunpack.c.l.b16 %v108
    %v288 = vunpack.c.h.b16 %v108
    %v289 = vunpack.c.l.b16 %v109
    %v290 = vunpack.c.h.b16 %v109
    %v291 = vunpack.c.l.b16 %v110
    %v292 = vunpack.c.h.b16 %v110
    %v293 = vunpack.c.l.b16 %v111
    %v294 = vunpack.c.h.b16 %v111
    %v295 = vunpack.c.l.b16 %v112
    %v296 = vunpack.c.h.b16 %v112
    %v297 = vunpack.c.l.b16 %v113
    %v298 = vunpack.c.h.b16 %v113
    %v299 = vunpack.c.l.b16 %v114
    %v300 = vunpack.c.h.b16 %v114
    %v301 = vunpack.c.l.b16 %v115
    %v302 = vunpack.c.h.b16 %v115
    %v303 = vunpack.c.l.b16 %v116
    %v304 = vunpack.c.h.b16 %v116
    %v305 = vunpack.c.l.b16 %v117
    %v306 = vunpack.c.h.b16 %v117
    %v307 = vunpack.c.l.b16 %v118
    %v308 = vunpack.c.h.b16 %v118
    %v309 = vunpack.c.l.b16 %v119
    %v310 = vunpack.c.h.b16 %v119
    %v311 = vunpack.c.l.b16 %v120
    %v312 = vunpack.c.h.b16 %v120
    %v313 = vunpack.c.l.b16 %v121
    %v314 = vunpack.c.h.b16 %v121
    %v315 = vunpack.c.l.b16 %v122
    %v316 = vunpack.c.h.b16 %v122
    %v317 = vunpack.c.l.b16 %v123
    %v318 = vunpack.c.h.b16 %v123
    %v319 = vunpack.c.l.b16 %v124
    %v320 = vunpack.c.h.b16 %v124
    %v321 = vunpack.c.l.b16 %v125
    %v322 = vunpack.c.h.b16 %v125
    %v323 = vunpack.c.l.b16 %v126
    %v324 = vunpack.c.h.b16 %v126
    %v325 = vunpack.c.l.b16 %v127
    %v326 = vunpack.c.h.b16 %v127
    %v327 = vunpack.c.l.b16 %v128
    %v328 = vunpack.c.h.b16 %v128
    %v329 = vunpack.c.l.b16 %v129
    %v330 = vunpack.c.h.b16 %v129
    %v331 = vunpack.c.l.b16 %v130
    %v332 = vunpack.c.h.b16 %v130
    %v333 = vunpack.c.l.b16 %v131
    %v334 = vunpack.c.h.b16 %v131
    %v335 = vunpack.c.l.b16 %v132
    %v336 = vunpack.c.h.b16 %v132
    %v337 = vunpack.c.l.b16 %v133
    %v338 = vunpack.c.h.b16 %v133
    %v339 = vunpack.c.l.b16 %v134
    %v340 = vunpack.c.h.b16 %v134
    %v341 = vunpack.c.l.b16 %v135
    %v342 = vunpack.c.h.b16 %v135
    %v343 = vunpack.c.l.b16 %v136
    %v344 = vunpack.c.h.b16 %v136
    %v345 = vunpack.c.l.b16 %v137
    %v346 = vunpack.c.h.b16 %v137
    %v347 = vunpack.c.l.b16 %v138
    %v348 = vunpack.c.h.b16 %v138
    %v349 = vunpack.c.l.b16 %v139
    %v350 = vunpack.c.h.b16 %v139
    %v351 = vunpack.c.l.b16 %v140
    %v352 = vunpack.c.h.b16 %v140
    %v353 = vunpack.c.l.b16 %v141
    %v354 = vunpack.c.h.b16 %v141
    %v355 = vunpack.c.l.b16 %v142
    %v356 = vunpack.c.h.b16 %v142
    %v357 = vpack.c.b16 %v233, %v229
    %v358 = vpack.c.b16 %v234, %v230
    %v359 = vpack.c.b16 %v235, %v231
    %v360 = vpack.c.b16 %v236, %v232
    %v361 = vpack.c.b16 %v241, %v237
    %v362 = vpack.c.b16 %v242, %v238
    %v363 = vpack.c.b16 %v243, %v239
    %v364 = vpack.c.b16 %v244, %v240
    %v365 = vpack.c.b16 %v249, %v245
    %v366 = vpack.c.b16 %v250, %v246
    %v367 = vpack.c.b16 %v251, %v247
    %v368 = vpack.c.b16 %v252, %v248
    %v369 = vpack.c.b16 %v257, %v253
    %v370 = vpack.c.b16 %v258, %v254
    %v371 = vpack.c.b16 %v259, %v255
    %v372 = vpack.c.b16 %v260, %v256
    %v373 = vpack.c.b16 %v265, %v261
    %v374 = vpack.c.b16 %v266, %v262
    %v375 = vpack.c.b16 %v267, %v263
    %v376 = vpack.c.b16 %v268, %v264
    %v377 = vpack.c.b16 %v273, %v269
    %v378 = vpack.c.b16 %v274, %v270
    %v379 = vpack.c.b16 %v275, %v271
    %v380 = vpack.c.b16 %v276, %v272
    %v381 = vpack.c.b16 %v281, %v277
    %v382 = vpack.c.b16 %v282, %v278
    %v383 = vpack.c.b16 %v283, %v279
    %v384 = vpack.c.b16 %v284, %v280
    %v385 = vpack.c.b16 %v289, %v285
    %v386 = vpack.c.b16 %v290, %v286
    %v387 = vpack.c.b16 %v291, %v287
    %v388 = vpack.c.b16 %v292, %v288
    %v389 = vpack.c.b16 %v297, %v293
    %v390 = vpack.c.b16 %v298, %v294
    %v391 = vpack.c.b16 %v299, %v295
    %v392 = vpack.c.b16 %v300, %v296
    %v393 = vpack.c.b16 %v305, %v301
    %v394 = vpack.c.b16 %v306, %v302
    %v395 = vpack.c.b16 %v307, %v303
    %v396 = vpack.c.b16 %v308, %v304
    %v397 = vpack.c.b16 %v313, %v309
    %v398 = vpack.c.b16 %v314, %v310
    %v399 = vpack.c.b16 %v315, %v311
    %v400 = vpack.c.b16 %v316, %v312
    %v401 = vpack.c.b16 %v321, %v317
    %v402 = vpack.c.b16 %v322, %v318
    %v403 = vpack.c.b16 %v323, %v319
    %v404 = vpack.c.b16 %v324, %v320
    %v405 = vpack.c.b16 %v329, %v325
    %v406 = vpack.c.b16 %v330, %v326
    %v407 = vpack.c.b16 %v331, %v327
    %v408 = vpack.c.b16 %v332, %v328
    %v409 = vpack.c.b16 %v337, %v333
    %v410 = vpack.c.b16 %v338, %v334
    %v411 = vpack.c.b16 %v339, %v335
    %v412 = vpack.c.b16 %v340, %v336
    %v413 = vpack.c.b16 %v345, %v341
    %v414 = vpack.c.b16 %v346, %v342
    %v415 = vpack.c.b16 %v347, %v343
    %v416 = vpack.c.b16 %v348, %v344
    %v417 = vpack.c.b16 %v353, %v349
    %v418 = vpack.c.b16 %v354, %v350
    %v419 = vpack.c.b16 %v355, %v351
    %v420 = vpack.c.b16 %v356, %v352
    %485 = vmatprep.subr.bf16.mxu0 %v358
    %486 = vmatpush1.bf16.msra.mxu0 %v357
    %487 = vmatprep.subr.bf16.mxu0 %v362
    %488 = vmatpush1.bf16.msra.mxu0 %v361
    %489 = vmatprep.subr.bf16.mxu0 %v366
    %490 = vmatpush1.bf16.msra.mxu0 %v365
    %491 = vmatprep.subr.bf16.mxu0 %v370
    %492 = vmatpush1.bf16.msra.mxu0 %v369
    %493 = vmatprep.subr.bf16.mxu0 %v374
    %494 = vmatpush1.bf16.msra.mxu0 %v373
    %495 = vmatprep.subr.bf16.mxu0 %v378
    %496 = vmatpush1.bf16.msra.mxu0 %v377
    %497 = vmatprep.subr.bf16.mxu0 %v382
    %498 = vmatpush1.bf16.msra.mxu0 %v381
    %499 = vmatprep.subr.bf16.mxu0 %v386
    %500 = vmatpush1.bf16.msra.mxu0 %v385
    %501 = vmatprep.subr.bf16.mxu0 %v390
    %502 = vmatpush1.bf16.msra.mxu0 %v389
    %503 = vmatprep.subr.bf16.mxu0 %v394
    %504 = vmatpush1.bf16.msra.mxu0 %v393
    %505 = vmatprep.subr.bf16.mxu0 %v398
    %506 = vmatpush1.bf16.msra.mxu0 %v397
    %507 = vmatprep.subr.bf16.mxu0 %v402
    %508 = vmatpush1.bf16.msra.mxu0 %v401
    %509 = vmatprep.subr.bf16.mxu0 %v406
    %510 = vmatpush1.bf16.msra.mxu0 %v405
    %511 = vmatprep.subr.bf16.mxu0 %v410
    %512 = vmatpush1.bf16.msra.mxu0 %v409
    %513 = vmatprep.subr.bf16.mxu0 %v414
    %514 = vmatpush1.bf16.msra.mxu0 %v413
    %515 = vmatprep.subr.bf16.mxu0 %v418
    %516 = vmatpush1.bf16.msra.mxu0 %v417
    %517 = vmatprep.mubr.bf16.mxu0 %v78
    %518 = vmatmul.mubr.bf16.gmra.mrb[0].mxu0 %v77
    %v519 = vpop.f32.mrb[0].mxu0
    %v520 = vadd.f32 %v148, %v519
    %v521 = vpop.f32.mrb[0].mxu0
    %v522 = vadd.f32 %v152, %v521
    %v523 = vpop.f32.mrb[0].mxu0
    %v524 = vpop.f32.mrb[0].mxu0
    %525 = vdwg.mxu0
    %526 = vmatprep.subr.bf16.mxu0 %v360
    %527 = vmatpush1.bf16.msra.mxu0 %v359
    %528 = vmatprep.subr.bf16.mxu0 %v364
    %529 = vmatpush1.bf16.msra.mxu0 %v363
    %530 = vmatprep.subr.bf16.mxu0 %v368
    %531 = vmatpush1.bf16.msra.mxu0 %v367
    %532 = vmatprep.subr.bf16.mxu0 %v372
    %533 = vmatpush1.bf16.msra.mxu0 %v371
    %534 = vmatprep.subr.bf16.mxu0 %v376
    %535 = vmatpush1.bf16.msra.mxu0 %v375
    %536 = vmatprep.subr.bf16.mxu0 %v380
    %537 = vmatpush1.bf16.msra.mxu0 %v379
    %538 = vmatprep.subr.bf16.mxu0 %v384
    %539 = vmatpush1.bf16.msra.mxu0 %v383
    %540 = vmatprep.subr.bf16.mxu0 %v388
    %541 = vmatpush1.bf16.msra.mxu0 %v387
    %542 = vmatprep.subr.bf16.mxu0 %v392
    %543 = vmatpush1.bf16.msra.mxu0 %v391
    %544 = vmatprep.subr.bf16.mxu0 %v396
    %545 = vmatpush1.bf16.msra.mxu0 %v395
    %546 = vmatprep.subr.bf16.mxu0 %v400
    %547 = vmatpush1.bf16.msra.mxu0 %v399
    %548 = vmatprep.subr.bf16.mxu0 %v404
    %549 = vmatpush1.bf16.msra.mxu0 %v403
    %550 = vmatprep.subr.bf16.mxu0 %v408
    %551 = vmatpush1.bf16.msra.mxu0 %v407
    %552 = vmatprep.subr.bf16.mxu0 %v412
    %553 = vmatpush1.bf16.msra.mxu0 %v411
    %554 = vmatprep.subr.bf16.mxu0 %v416
    %555 = vmatpush1.bf16.msra.mxu0 %v415
    %556 = vmatprep.subr.bf16.mxu0 %v420
    %557 = vmatpush1.bf16.msra.mxu0 %v419
    %558 = vmatprep.mubr.bf16.mxu0 %v78
    %559 = vmatmul.mubr.bf16.gmra.mrb[0].mxu0 %v77
    %v560 = vpop.f32.mrb[0].mxu0
    %v561 = vadd.f32 %v156, %v560
    %v562 = vpop.f32.mrb[0].mxu0
    %v563 = vadd.f32 %v160, %v562
    %v564 = vpop.f32.mrb[0].mxu0
    %v565 = vpop.f32.mrb[0].mxu0
    %566 = vdwg.mxu0
    %v567 = vmax.f32 %v520, 0.0
    %v568 = vmax.f32 %v522, 0.0
    %v569 = vmax.f32 %v561, 0.0
    %v570 = vmax.f32 %v563, 0.0
    %v571 = vpack.c.bf16 %v567, %v567
    %v572 = vpack.c.bf16 %v568, %v568
    %v573 = vpack.c.bf16 %v569, %v569
    %v574 = vpack.c.bf16 %v570, %v570
    %v575 = vld [vmem:[#allocation5] sm:$0xff]
    %v576 = vld [vmem:[#allocation5 + $0x8] sm:$0xff]
    %v577 = vld [vmem:[#allocation5 + $0x10] sm:$0xff]
    %v578 = vld [vmem:[#allocation5 + $0x18] sm:$0xff]
    %v579 = vld [vmem:[#allocation5 + $0x20] sm:$0xff]
    %v580 = vld [vmem:[#allocation5 + $0x28] sm:$0xff]
    %v581 = vld [vmem:[#allocation5 + $0x30] sm:$0xff]
    %v582 = vld [vmem:[#allocation5 + $0x38] sm:$0xff]
    %v583 = vld [vmem:[#allocation5 + $0x40] sm:$0xff]
    %v584 = vld [vmem:[#allocation5 + $0x48] sm:$0xff]
    %v585 = vld [vmem:[#allocation5 + $0x50] sm:$0xff]
    %v586 = vld [vmem:[#allocation5 + $0x58] sm:$0xff]
    %v587 = vld [vmem:[#allocation5 + $0x60] sm:$0xff]
    %v588 = vld [vmem:[#allocation5 + $0x68] sm:$0xff]
    %v589 = vld [vmem:[#allocation5 + $0x70] sm:$0xff]
    %v590 = vld [vmem:[#allocation5 + $0x78] sm:$0xff]
    %v591 = vld [vmem:[#allocation5 + $0x80] sm:$0xff]
    %v592 = vld [vmem:[#allocation5 + $0x88] sm:$0xff]
    %v593 = vld [vmem:[#allocation5 + $0x90] sm:$0xff]
    %v594 = vld [vmem:[#allocation5 + $0x98] sm:$0xff]
    %v595 = vld [vmem:[#allocation5 + $0xa0] sm:$0xff]
    %v596 = vld [vmem:[#allocation5 + $0xa8] sm:$0xff]
    %v597 = vld [vmem:[#allocation5 + $0xb0] sm:$0xff]
    %v598 = vld [vmem:[#allocation5 + $0xb8] sm:$0xff]
    %v599 = vld [vmem:[#allocation5 + $0xc0] sm:$0xff]
    %v600 = vld [vmem:[#allocation5 + $0xc8] sm:$0xff]
    %v601 = vld [vmem:[#allocation5 + $0xd0] sm:$0xff]
    %v602 = vld [vmem:[#allocation5 + $0xd8] sm:$0xff]
    %v603 = vld [vmem:[#allocation5 + $0xe0] sm:$0xff]
    %v604 = vld [vmem:[#allocation5 + $0xe8] sm:$0xff]
    %v605 = vld [vmem:[#allocation5 + $0xf0] sm:$0xff]
    %v606 = vld [vmem:[#allocation5 + $0xf8] sm:$0xff]
    %v607 = vld [vmem:[#allocation5 + $0x100] sm:$0xff]
    %v608 = vld [vmem:[#allocation5 + $0x108] sm:$0xff]
    %v609 = vld [vmem:[#allocation5 + $0x110] sm:$0xff]
    %v610 = vld [vmem:[#allocation5 + $0x118] sm:$0xff]
    %v611 = vld [vmem:[#allocation5 + $0x120] sm:$0xff]
    %v612 = vld [vmem:[#allocation5 + $0x128] sm:$0xff]
    %v613 = vld [vmem:[#allocation5 + $0x130] sm:$0xff]
    %v614 = vld [vmem:[#allocation5 + $0x138] sm:$0xff]
    %v615 = vld [vmem:[#allocation5 + $0x140] sm:$0xff]
    %v616 = vld [vmem:[#allocation5 + $0x148] sm:$0xff]
    %v617 = vld [vmem:[#allocation5 + $0x150] sm:$0xff]
    %v618 = vld [vmem:[#allocation5 + $0x158] sm:$0xff]
    %v619 = vld [vmem:[#allocation5 + $0x160] sm:$0xff]
    %v620 = vld [vmem:[#allocation5 + $0x168] sm:$0xff]
    %v621 = vld [vmem:[#allocation5 + $0x170] sm:$0xff]
    %v622 = vld [vmem:[#allocation5 + $0x178] sm:$0xff]
    %v623 = vld [vmem:[#allocation5 + $0x180] sm:$0xff]
    %v624 = vld [vmem:[#allocation5 + $0x188] sm:$0xff]
    %v625 = vld [vmem:[#allocation5 + $0x190] sm:$0xff]
    %v626 = vld [vmem:[#allocation5 + $0x198] sm:$0xff]
    %v627 = vld [vmem:[#allocation5 + $0x1a0] sm:$0xff]
    %v628 = vld [vmem:[#allocation5 + $0x1a8] sm:$0xff]
    %v629 = vld [vmem:[#allocation5 + $0x1b0] sm:$0xff]
    %v630 = vld [vmem:[#allocation5 + $0x1b8] sm:$0xff]
    %v631 = vld [vmem:[#allocation5 + $0x1c0] sm:$0xff]
    %v632 = vld [vmem:[#allocation5 + $0x1c8] sm:$0xff]
    %v633 = vld [vmem:[#allocation5 + $0x1d0] sm:$0xff]
    %v634 = vld [vmem:[#allocation5 + $0x1d8] sm:$0xff]
    %v635 = vld [vmem:[#allocation5 + $0x1e0] sm:$0xff]
    %v636 = vld [vmem:[#allocation5 + $0x1e8] sm:$0xff]
    %v637 = vld [vmem:[#allocation5 + $0x1f0] sm:$0xff]
    %v638 = vld [vmem:[#allocation5 + $0x1f8] sm:$0xff]
    %v639 = vld [vmem:[%s4] sm:$0x3]
    %v641 = vlaneseq
    %v642 = vshrl.u32 %v641, 7
    %v643 = vsub.s32 0, %v642
    %v644 = vrot.slane %v639, %v643
    %v645 = vlaneseq
    %v646 = vshrl.u32 %v645, 7
    %v647 = vsub.s32 1, %v646
    %v648 = vrot.slane %v639, %v647
    %v715 = vunpack.c.l.b16 %v575
    %v716 = vunpack.c.h.b16 %v575
    %v717 = vunpack.c.l.b16 %v576
    %v718 = vunpack.c.h.b16 %v576
    %v719 = vunpack.c.l.b16 %v577
    %v720 = vunpack.c.h.b16 %v577
    %v721 = vunpack.c.l.b16 %v578
    %v722 = vunpack.c.h.b16 %v578
    %v723 = vunpack.c.l.b16 %v579
    %v724 = vunpack.c.h.b16 %v579
    %v725 = vunpack.c.l.b16 %v580
    %v726 = vunpack.c.h.b16 %v580
    %v727 = vunpack.c.l.b16 %v581
    %v728 = vunpack.c.h.b16 %v581
    %v729 = vunpack.c.l.b16 %v582
    %v730 = vunpack.c.h.b16 %v582
    %v731 = vunpack.c.l.b16 %v583
    %v732 = vunpack.c.h.b16 %v583
    %v733 = vunpack.c.l.b16 %v584
    %v734 = vunpack.c.h.b16 %v584
    %v735 = vunpack.c.l.b16 %v585
    %v736 = vunpack.c.h.b16 %v585
    %v737 = vunpack.c.l.b16 %v586
    %v738 = vunpack.c.h.b16 %v586
    %v739 = vunpack.c.l.b16 %v587
    %v740 = vunpack.c.h.b16 %v587
    %v741 = vunpack.c.l.b16 %v588
    %v742 = vunpack.c.h.b16 %v588
    %v743 = vunpack.c.l.b16 %v589
    %v744 = vunpack.c.h.b16 %v589
    %v745 = vunpack.c.l.b16 %v590
    %v746 = vunpack.c.h.b16 %v590
    %v747 = vunpack.c.l.b16 %v591
    %v748 = vunpack.c.h.b16 %v591
    %v749 = vunpack.c.l.b16 %v592
    %v750 = vunpack.c.h.b16 %v592
    %v751 = vunpack.c.l.b16 %v593
    %v752 = vunpack.c.h.b16 %v593
    %v753 = vunpack.c.l.b16 %v594
    %v754 = vunpack.c.h.b16 %v594
    %v755 = vunpack.c.l.b16 %v595
    %v756 = vunpack.c.h.b16 %v595
    %v757 = vunpack.c.l.b16 %v596
    %v758 = vunpack.c.h.b16 %v596
    %v759 = vunpack.c.l.b16 %v597
    %v760 = vunpack.c.h.b16 %v597
    %v761 = vunpack.c.l.b16 %v598
    %v762 = vunpack.c.h.b16 %v598
    %v763 = vunpack.c.l.b16 %v599
    %v764 = vunpack.c.h.b16 %v599
    %v765 = vunpack.c.l.b16 %v600
    %v766 = vunpack.c.h.b16 %v600
    %v767 = vunpack.c.l.b16 %v601
    %v768 = vunpack.c.h.b16 %v601
    %v769 = vunpack.c.l.b16 %v602
    %v770 = vunpack.c.h.b16 %v602
    %v771 = vunpack.c.l.b16 %v603
    %v772 = vunpack.c.h.b16 %v603
    %v773 = vunpack.c.l.b16 %v604
    %v774 = vunpack.c.h.b16 %v604
    %v775 = vunpack.c.l.b16 %v605
    %v776 = vunpack.c.h.b16 %v605
    %v777 = vunpack.c.l.b16 %v606
    %v778 = vunpack.c.h.b16 %v606
    %v779 = vunpack.c.l.b16 %v607
    %v780 = vunpack.c.h.b16 %v607
    %v781 = vunpack.c.l.b16 %v608
    %v782 = vunpack.c.h.b16 %v608
    %v783 = vunpack.c.l.b16 %v609
    %v784 = vunpack.c.h.b16 %v609
    %v785 = vunpack.c.l.b16 %v610
    %v786 = vunpack.c.h.b16 %v610
    %v787 = vunpack.c.l.b16 %v611
    %v788 = vunpack.c.h.b16 %v611
    %v789 = vunpack.c.l.b16 %v612
    %v790 = vunpack.c.h.b16 %v612
    %v791 = vunpack.c.l.b16 %v613
    %v792 = vunpack.c.h.b16 %v613
    %v793 = vunpack.c.l.b16 %v614
    %v794 = vunpack.c.h.b16 %v614
    %v795 = vunpack.c.l.b16 %v615
    %v796 = vunpack.c.h.b16 %v615
    %v797 = vunpack.c.l.b16 %v616
    %v798 = vunpack.c.h.b16 %v616
    %v799 = vunpack.c.l.b16 %v617
    %v800 = vunpack.c.h.b16 %v617
    %v801 = vunpack.c.l.b16 %v618
    %v802 = vunpack.c.h.b16 %v618
    %v803 = vunpack.c.l.b16 %v619
    %v804 = vunpack.c.h.b16 %v619
    %v805 = vunpack.c.l.b16 %v620
    %v806 = vunpack.c.h.b16 %v620
    %v807 = vunpack.c.l.b16 %v621
    %v808 = vunpack.c.h.b16 %v621
    %v809 = vunpack.c.l.b16 %v622
    %v810 = vunpack.c.h.b16 %v622
    %v811 = vunpack.c.l.b16 %v623
    %v812 = vunpack.c.h.b16 %v623
    %v813 = vunpack.c.l.b16 %v624
    %v814 = vunpack.c.h.b16 %v624
    %v815 = vunpack.c.l.b16 %v625
    %v816 = vunpack.c.h.b16 %v625
    %v817 = vunpack.c.l.b16 %v626
    %v818 = vunpack.c.h.b16 %v626
    %v819 = vunpack.c.l.b16 %v627
    %v820 = vunpack.c.h.b16 %v627
    %v821 = vunpack.c.l.b16 %v628
    %v822 = vunpack.c.h.b16 %v628
    %v823 = vunpack.c.l.b16 %v629
    %v824 = vunpack.c.h.b16 %v629
    %v825 = vunpack.c.l.b16 %v630
    %v826 = vunpack.c.h.b16 %v630
    %v827 = vunpack.c.l.b16 %v631
    %v828 = vunpack.c.h.b16 %v631
    %v829 = vunpack.c.l.b16 %v632
    %v830 = vunpack.c.h.b16 %v632
    %v831 = vunpack.c.l.b16 %v633
    %v832 = vunpack.c.h.b16 %v633
    %v833 = vunpack.c.l.b16 %v634
    %v834 = vunpack.c.h.b16 %v634
    %v835 = vunpack.c.l.b16 %v635
    %v836 = vunpack.c.h.b16 %v635
    %v837 = vunpack.c.l.b16 %v636
    %v838 = vunpack.c.h.b16 %v636
    %v839 = vunpack.c.l.b16 %v637
    %v840 = vunpack.c.h.b16 %v637
    %v841 = vunpack.c.l.b16 %v638
    %v842 = vunpack.c.h.b16 %v638
    %v843 = vpack.c.b16 %v717, %v715
    %v844 = vpack.c.b16 %v718, %v716
    %v845 = vpack.c.b16 %v721, %v719
    %v846 = vpack.c.b16 %v722, %v720
    %v847 = vpack.c.b16 %v725, %v723
    %v848 = vpack.c.b16 %v726, %v724
    %v849 = vpack.c.b16 %v729, %v727
    %v850 = vpack.c.b16 %v730, %v728
    %v851 = vpack.c.b16 %v733, %v731
    %v852 = vpack.c.b16 %v734, %v732
    %v853 = vpack.c.b16 %v737, %v735
    %v854 = vpack.c.b16 %v738, %v736
    %v855 = vpack.c.b16 %v741, %v739
    %v856 = vpack.c.b16 %v742, %v740
    %v857 = vpack.c.b16 %v745, %v743
    %v858 = vpack.c.b16 %v746, %v744
    %v859 = vpack.c.b16 %v749, %v747
    %v860 = vpack.c.b16 %v750, %v748
    %v861 = vpack.c.b16 %v753, %v751
    %v862 = vpack.c.b16 %v754, %v752
    %v863 = vpack.c.b16 %v757, %v755
    %v864 = vpack.c.b16 %v758, %v756
    %v865 = vpack.c.b16 %v761, %v759
    %v866 = vpack.c.b16 %v762, %v760
    %v867 = vpack.c.b16 %v765, %v763
    %v868 = vpack.c.b16 %v766, %v764
    %v869 = vpack.c.b16 %v769, %v767
    %v870 = vpack.c.b16 %v770, %v768
    %v871 = vpack.c.b16 %v773, %v771
    %v872 = vpack.c.b16 %v774, %v772
    %v873 = vpack.c.b16 %v777, %v775
    %v874 = vpack.c.b16 %v778, %v776
    %v875 = vpack.c.b16 %v781, %v779
    %v876 = vpack.c.b16 %v782, %v780
    %v877 = vpack.c.b16 %v785, %v783
    %v878 = vpack.c.b16 %v786, %v784
    %v879 = vpack.c.b16 %v789, %v787
    %v880 = vpack.c.b16 %v790, %v788
    %v881 = vpack.c.b16 %v793, %v791
    %v882 = vpack.c.b16 %v794, %v792
    %v883 = vpack.c.b16 %v797, %v795
    %v884 = vpack.c.b16 %v798, %v796
    %v885 = vpack.c.b16 %v801, %v799
    %v886 = vpack.c.b16 %v802, %v800
    %v887 = vpack.c.b16 %v805, %v803
    %v888 = vpack.c.b16 %v806, %v804
    %v889 = vpack.c.b16 %v809, %v807
    %v890 = vpack.c.b16 %v810, %v808
    %v891 = vpack.c.b16 %v813, %v811
    %v892 = vpack.c.b16 %v814, %v812
    %v893 = vpack.c.b16 %v817, %v815
    %v894 = vpack.c.b16 %v818, %v816
    %v895 = vpack.c.b16 %v821, %v819
    %v896 = vpack.c.b16 %v822, %v820
    %v897 = vpack.c.b16 %v825, %v823
    %v898 = vpack.c.b16 %v826, %v824
    %v899 = vpack.c.b16 %v829, %v827
    %v900 = vpack.c.b16 %v830, %v828
    %v901 = vpack.c.b16 %v833, %v831
    %v902 = vpack.c.b16 %v834, %v832
    %v903 = vpack.c.b16 %v837, %v835
    %v904 = vpack.c.b16 %v838, %v836
    %v905 = vpack.c.b16 %v841, %v839
    %v906 = vpack.c.b16 %v842, %v840
    %971 = vmatprep.subr.bf16.mxu0 %v844
    %972 = vmatpush1.bf16.msra.mxu0 %v843
    %973 = vmatprep.subr.bf16.mxu0 %v846
    %974 = vmatpush1.bf16.msra.mxu0 %v845
    %975 = vmatprep.subr.bf16.mxu0 %v848
    %976 = vmatpush1.bf16.msra.mxu0 %v847
    %977 = vmatprep.subr.bf16.mxu0 %v850
    %978 = vmatpush1.bf16.msra.mxu0 %v849
    %979 = vmatprep.subr.bf16.mxu0 %v852
    %980 = vmatpush1.bf16.msra.mxu0 %v851
    %981 = vmatprep.subr.bf16.mxu0 %v854
    %982 = vmatpush1.bf16.msra.mxu0 %v853
    %983 = vmatprep.subr.bf16.mxu0 %v856
    %984 = vmatpush1.bf16.msra.mxu0 %v855
    %985 = vmatprep.subr.bf16.mxu0 %v858
    %986 = vmatpush1.bf16.msra.mxu0 %v857
    %987 = vmatprep.subr.bf16.mxu0 %v860
    %988 = vmatpush1.bf16.msra.mxu0 %v859
    %989 = vmatprep.subr.bf16.mxu0 %v862
    %990 = vmatpush1.bf16.msra.mxu0 %v861
    %991 = vmatprep.subr.bf16.mxu0 %v864
    %992 = vmatpush1.bf16.msra.mxu0 %v863
    %993 = vmatprep.subr.bf16.mxu0 %v866
    %994 = vmatpush1.bf16.msra.mxu0 %v865
    %995 = vmatprep.subr.bf16.mxu0 %v868
    %996 = vmatpush1.bf16.msra.mxu0 %v867
    %997 = vmatprep.subr.bf16.mxu0 %v870
    %998 = vmatpush1.bf16.msra.mxu0 %v869
    %999 = vmatprep.subr.bf16.mxu0 %v872
    %1000 = vmatpush1.bf16.msra.mxu0 %v871
    %1001 = vmatprep.subr.bf16.mxu0 %v874
    %1002 = vmatpush1.bf16.msra.mxu0 %v873
    %1003 = vmatprep.mubr.bf16.mxu0 %v572
    %1004 = vmatmul.mubr.bf16.gmra.mrb[0].mxu0 %v571
    %v1005 = vpop.f32.mrb[0].mxu0
    %v1006 = vadd.f32 %v644, %v1005
    %v1007 = vpop.f32.mrb[0].mxu0
    %v1008 = vadd.f32 %v648, %v1007
    %v1009 = vpop.f32.mrb[0].mxu0
    %v1010 = vpop.f32.mrb[0].mxu0
    %1011 = vdwg.mxu0
    %1012 = vmatprep.subr.bf16.mxu0 %v876
    %1013 = vmatpush1.bf16.msra.mxu0 %v875
    %1014 = vmatprep.subr.bf16.mxu0 %v878
    %1015 = vmatpush1.bf16.msra.mxu0 %v877
    %1016 = vmatprep.subr.bf16.mxu0 %v880
    %1017 = vmatpush1.bf16.msra.mxu0 %v879
    %1018 = vmatprep.subr.bf16.mxu0 %v882
    %1019 = vmatpush1.bf16.msra.mxu0 %v881
    %1020 = vmatprep.subr.bf16.mxu0 %v884
    %1021 = vmatpush1.bf16.msra.mxu0 %v883
    %1022 = vmatprep.subr.bf16.mxu0 %v886
    %1023 = vmatpush1.bf16.msra.mxu0 %v885
    %1024 = vmatprep.subr.bf16.mxu0 %v888
    %1025 = vmatpush1.bf16.msra.mxu0 %v887
    %1026 = vmatprep.subr.bf16.mxu0 %v890
    %1027 = vmatpush1.bf16.msra.mxu0 %v889
    %1028 = vmatprep.subr.bf16.mxu0 %v892
    %1029 = vmatpush1.bf16.msra.mxu0 %v891
    %1030 = vmatprep.subr.bf16.mxu0 %v894
    %1031 = vmatpush1.bf16.msra.mxu0 %v893
    %1032 = vmatprep.subr.bf16.mxu0 %v896
    %1033 = vmatpush1.bf16.msra.mxu0 %v895
    %1034 = vmatprep.subr.bf16.mxu0 %v898
    %1035 = vmatpush1.bf16.msra.mxu0 %v897
    %1036 = vmatprep.subr.bf16.mxu0 %v900
    %1037 = vmatpush1.bf16.msra.mxu0 %v899
    %1038 = vmatprep.subr.bf16.mxu0 %v902
    %1039 = vmatpush1.bf16.msra.mxu0 %v901
    %1040 = vmatprep.subr.bf16.mxu0 %v904
    %1041 = vmatpush1.bf16.msra.mxu0 %v903
    %1042 = vmatprep.subr.bf16.mxu0 %v906
    %1043 = vmatpush1.bf16.msra.mxu0 %v905
    %1044 = vmatprep.mubr.bf16.mxu0 %v574
    %1045 = vmatmul.mubr.bf16.gmra.mrb[0].mxu0 %v573
    %v1046 = vpop.f32.mrb[0].mxu0
    %v1047 = vadd.f32 %v1006, %v1046
    %v1048 = vpop.f32.mrb[0].mxu0
    %v1049 = vadd.f32 %v1008, %v1048
    %v1050 = vpop.f32.mrb[0].mxu0
    %v1051 = vpop.f32.mrb[0].mxu0
    %1052 = vdwg.mxu0
    %v1053 = vmax.f32 %v1047, 0.0
    %v1054 = vmax.f32 %v1049, 0.0
    %v1055 = vpack.c.bf16 %v1053, %v1053
    %v1056 = vpack.c.bf16 %v1054, %v1054
    %v1057 = vld [vmem:[#allocation7] sm:$0xf]
    %v1058 = vld [vmem:[#allocation7 + $0x4] sm:$0xf]
    %v1059 = vld [vmem:[#allocation7 + $0x8] sm:$0xf]
    %v1060 = vld [vmem:[#allocation7 + $0xc] sm:$0xf]
    %v1061 = vld [vmem:[#allocation7 + $0x10] sm:$0xf]
    %v1062 = vld [vmem:[#allocation7 + $0x14] sm:$0xf]
    %v1063 = vld [vmem:[#allocation7 + $0x18] sm:$0xf]
    %v1064 = vld [vmem:[#allocation7 + $0x1c] sm:$0xf]
    %v1065 = vld [vmem:[#allocation7 + $0x20] sm:$0xf]
    %v1066 = vld [vmem:[#allocation7 + $0x24] sm:$0xf]
    %v1067 = vld [vmem:[#allocation7 + $0x28] sm:$0xf]
    %v1068 = vld [vmem:[#allocation7 + $0x2c] sm:$0xf]
    %v1069 = vld [vmem:[#allocation7 + $0x30] sm:$0xf]
    %v1070 = vld [vmem:[#allocation7 + $0x34] sm:$0xf]
    %v1071 = vld [vmem:[#allocation7 + $0x38] sm:$0xf]
    %v1072 = vld [vmem:[#allocation7 + $0x3c] sm:$0xf]
    %v1073 = vld [vmem:[#allocation7 + $0x40] sm:$0xf]
    %v1074 = vld [vmem:[#allocation7 + $0x44] sm:$0xf]
    %v1075 = vld [vmem:[#allocation7 + $0x48] sm:$0xf]
    %v1076 = vld [vmem:[#allocation7 + $0x4c] sm:$0xf]
    %v1077 = vld [vmem:[#allocation7 + $0x50] sm:$0xf]
    %v1078 = vld [vmem:[#allocation7 + $0x54] sm:$0xf]
    %v1079 = vld [vmem:[#allocation7 + $0x58] sm:$0xf]
    %v1080 = vld [vmem:[#allocation7 + $0x5c] sm:$0xf]
    %v1081 = vld [vmem:[#allocation7 + $0x60] sm:$0xf]
    %v1082 = vld [vmem:[#allocation7 + $0x64] sm:$0xf]
    %v1083 = vld [vmem:[#allocation7 + $0x68] sm:$0xf]
    %v1084 = vld [vmem:[#allocation7 + $0x6c] sm:$0xf]
    %v1085 = vld [vmem:[#allocation7 + $0x70] sm:$0xf]
    %v1086 = vld [vmem:[#allocation7 + $0x74] sm:$0xf]
    %v1087 = vld [vmem:[#allocation7 + $0x78] sm:$0xf]
    %v1088 = vld [vmem:[#allocation7 + $0x7c] sm:$0xf]
    %v1089 = vld [vmem:[%s6] sm:$0x1]
    %v1091 = vlaneseq
    %v1092 = vshrl.u32 %v1091, 7
    %v1093 = vsub.s32 0, %v1092
    %v1094 = vrot.slane %v1089, %v1093
    %v1128 = vunpack.c.l.b16 %v1057
    %v1129 = vunpack.c.l.b16 %v1058
    %v1130 = vunpack.c.l.b16 %v1059
    %v1131 = vunpack.c.l.b16 %v1060
    %v1132 = vunpack.c.l.b16 %v1061
    %v1133 = vunpack.c.l.b16 %v1062
    %v1134 = vunpack.c.l.b16 %v1063
    %v1135 = vunpack.c.l.b16 %v1064
    %v1136 = vunpack.c.l.b16 %v1065
    %v1137 = vunpack.c.l.b16 %v1066
    %v1138 = vunpack.c.l.b16 %v1067
    %v1139 = vunpack.c.l.b16 %v1068
    %v1140 = vunpack.c.l.b16 %v1069
    %v1141 = vunpack.c.l.b16 %v1070
    %v1142 = vunpack.c.l.b16 %v1071
    %v1143 = vunpack.c.l.b16 %v1072
    %v1144 = vunpack.c.l.b16 %v1073
    %v1145 = vunpack.c.l.b16 %v1074
    %v1146 = vunpack.c.l.b16 %v1075
    %v1147 = vunpack.c.l.b16 %v1076
    %v1148 = vunpack.c.l.b16 %v1077
    %v1149 = vunpack.c.l.b16 %v1078
    %v1150 = vunpack.c.l.b16 %v1079
    %v1151 = vunpack.c.l.b16 %v1080
    %v1152 = vunpack.c.l.b16 %v1081
    %v1153 = vunpack.c.l.b16 %v1082
    %v1154 = vunpack.c.l.b16 %v1083
    %v1155 = vunpack.c.l.b16 %v1084
    %v1156 = vunpack.c.l.b16 %v1085
    %v1157 = vunpack.c.l.b16 %v1086
    %v1158 = vunpack.c.l.b16 %v1087
    %v1159 = vunpack.c.l.b16 %v1088
    %v1160 = vpack.c.b16 %v1129, %v1128
    %v1161 = vpack.c.b16 %v1131, %v1130
    %v1162 = vpack.c.b16 %v1133, %v1132
    %v1163 = vpack.c.b16 %v1135, %v1134
    %v1164 = vpack.c.b16 %v1137, %v1136
    %v1165 = vpack.c.b16 %v1139, %v1138
    %v1166 = vpack.c.b16 %v1141, %v1140
    %v1167 = vpack.c.b16 %v1143, %v1142
    %v1168 = vpack.c.b16 %v1145, %v1144
    %v1169 = vpack.c.b16 %v1147, %v1146
    %v1170 = vpack.c.b16 %v1149, %v1148
    %v1171 = vpack.c.b16 %v1151, %v1150
    %v1172 = vpack.c.b16 %v1153, %v1152
    %v1173 = vpack.c.b16 %v1155, %v1154
    %v1174 = vpack.c.b16 %v1157, %v1156
    %v1175 = vpack.c.b16 %v1159, %v1158
    %1192 = vmatprep.subr.bf16.mxu0 0
    %1193 = vmatpush1.bf16.msra.mxu0 %v1160
    %1194 = vmatprep.subr.bf16.mxu0 0
    %1195 = vmatpush1.bf16.msra.mxu0 %v1161
    %1196 = vmatprep.subr.bf16.mxu0 0
    %1197 = vmatpush1.bf16.msra.mxu0 %v1162
    %1198 = vmatprep.subr.bf16.mxu0 0
    %1199 = vmatpush1.bf16.msra.mxu0 %v1163
    %1200 = vmatprep.subr.bf16.mxu0 0
    %1201 = vmatpush1.bf16.msra.mxu0 %v1164
    %1202 = vmatprep.subr.bf16.mxu0 0
    %1203 = vmatpush1.bf16.msra.mxu0 %v1165
    %1204 = vmatprep.subr.bf16.mxu0 0
    %1205 = vmatpush1.bf16.msra.mxu0 %v1166
    %1206 = vmatprep.subr.bf16.mxu0 0
    %1207 = vmatpush1.bf16.msra.mxu0 %v1167
    %1208 = vmatprep.subr.bf16.mxu0 0
    %1209 = vmatpush1.bf16.msra.mxu0 %v1168
    %1210 = vmatprep.subr.bf16.mxu0 0
    %1211 = vmatpush1.bf16.msra.mxu0 %v1169
    %1212 = vmatprep.subr.bf16.mxu0 0
    %1213 = vmatpush1.bf16.msra.mxu0 %v1170
    %1214 = vmatprep.subr.bf16.mxu0 0
    %1215 = vmatpush1.bf16.msra.mxu0 %v1171
    %1216 = vmatprep.subr.bf16.mxu0 0
    %1217 = vmatpush1.bf16.msra.mxu0 %v1172
    %1218 = vmatprep.subr.bf16.mxu0 0
    %1219 = vmatpush1.bf16.msra.mxu0 %v1173
    %1220 = vmatprep.subr.bf16.mxu0 0
    %1221 = vmatpush1.bf16.msra.mxu0 %v1174
    %1222 = vmatprep.subr.bf16.mxu0 0
    %1223 = vmatpush1.bf16.msra.mxu0 %v1175
    %1224 = vmatprep.mubr.bf16.mxu0 %v1056
    %1225 = vmatmul.mubr.bf16.gmra.mrb[0].mxu0 %v1055
    %v1226 = vpop.f32.mrb[0].mxu0
    %v1227 = vadd.f32 %v1094, %v1226
    %v1228 = vpop.f32.mrb[0].mxu0
    %v1229 = vpop.f32.mrb[0].mxu0
    %v1230 = vpop.f32.mrb[0].mxu0
    %1231 = vdwg.mxu0
    %v1232 = vmax.f32 %v1227, 0.0
    %v1233 = vpack.c.bf16 %v1232, %v1232
    %v1234 = vld [vmem:[%s7] sm:$0xf]
    %v1235 = vld [vmem:[%s7 + $0x4] sm:$0xf]
    %v1236 = vld [vmem:[%s7 + $0x8] sm:$0xf]
    %v1237 = vld [vmem:[%s7 + $0xc] sm:$0xf]
    %v1238 = vld [vmem:[%s7 + $0x10] sm:$0xf]
    %v1239 = vld [vmem:[%s7 + $0x14] sm:$0xf]
    %v1240 = vld [vmem:[%s7 + $0x18] sm:$0xf]
    %v1241 = vld [vmem:[%s7 + $0x1c] sm:$0xf]
    %v1242 = vld [vmem:[%s7 + $0x20] sm:$0xf]
    %v1243 = vld [vmem:[%s7 + $0x24] sm:$0xf]
    %v1244 = vld [vmem:[%s7 + $0x28] sm:$0xf]
    %v1245 = vld [vmem:[%s7 + $0x2c] sm:$0xf]
    %v1246 = vld [vmem:[%s7 + $0x30] sm:$0xf]
    %v1247 = vld [vmem:[%s7 + $0x34] sm:$0xf]
    %v1248 = vld [vmem:[%s7 + $0x38] sm:$0xf]
    %v1249 = vld [vmem:[%s7 + $0x3c] sm:$0xf]
    %v1250 = vld [vmem:[%s8] sm:$0x1]
    %v1252 = vlaneseq
    %v1253 = vshrl.u32 %v1252, 7
    %v1254 = vsub.s32 0, %v1253
    %v1255 = vrot.slane %v1250, %v1254
    %v1273 = vunpack.c.l.b16 %v1234
    %v1274 = vunpack.c.l.b16 %v1235
    %v1275 = vunpack.c.l.b16 %v1236
    %v1276 = vunpack.c.l.b16 %v1237
    %v1277 = vunpack.c.l.b16 %v1238
    %v1278 = vunpack.c.l.b16 %v1239
    %v1279 = vunpack.c.l.b16 %v1240
    %v1280 = vunpack.c.l.b16 %v1241
    %v1281 = vunpack.c.l.b16 %v1242
    %v1282 = vunpack.c.l.b16 %v1243
    %v1283 = vunpack.c.l.b16 %v1244
    %v1284 = vunpack.c.l.b16 %v1245
    %v1285 = vunpack.c.l.b16 %v1246
    %v1286 = vunpack.c.l.b16 %v1247
    %v1287 = vunpack.c.l.b16 %v1248
    %v1288 = vunpack.c.l.b16 %v1249
    %v1289 = vpack.c.b16 %v1274, %v1273
    %v1290 = vpack.c.b16 %v1276, %v1275
    %v1291 = vpack.c.b16 %v1278, %v1277
    %v1292 = vpack.c.b16 %v1280, %v1279
    %v1293 = vpack.c.b16 %v1282, %v1281
    %v1294 = vpack.c.b16 %v1284, %v1283
    %v1295 = vpack.c.b16 %v1286, %v1285
    %v1296 = vpack.c.b16 %v1288, %v1287
    %1305 = vmatprep.subr.bf16.mxu0 0
    %1306 = vmatpush1.bf16.msra.mxu0 %v1289
    %1307 = vmatprep.subr.bf16.mxu0 0
    %1308 = vmatpush1.bf16.msra.mxu0 %v1290
    %1309 = vmatprep.subr.bf16.mxu0 0
    %1310 = vmatpush1.bf16.msra.mxu0 %v1291
    %1311 = vmatprep.subr.bf16.mxu0 0
    %1312 = vmatpush1.bf16.msra.mxu0 %v1292
    %1313 = vmatprep.subr.bf16.mxu0 0
    %1314 = vmatpush1.bf16.msra.mxu0 %v1293
    %1315 = vmatprep.subr.bf16.mxu0 0
    %1316 = vmatpush1.bf16.msra.mxu0 %v1294
    %1317 = vmatprep.subr.bf16.mxu0 0
    %1318 = vmatpush1.bf16.msra.mxu0 %v1295
    %1319 = vmatprep.subr.bf16.mxu0 0
    %1320 = vmatpush1.bf16.msra.mxu0 %v1296
    %1321 = vmatprep.subr.bf16.mxu0 0
    %1322 = vmatpush1.bf16.msra.mxu0 0
    %1323 = vmatprep.subr.bf16.mxu0 0
    %1324 = vmatpush1.bf16.msra.mxu0 0
    %1325 = vmatprep.subr.bf16.mxu0 0
    %1326 = vmatpush1.bf16.msra.mxu0 0
    %1327 = vmatprep.subr.bf16.mxu0 0
    %1328 = vmatpush1.bf16.msra.mxu0 0
    %1329 = vmatprep.subr.bf16.mxu0 0
    %1330 = vmatpush1.bf16.msra.mxu0 0
    %1331 = vmatprep.subr.bf16.mxu0 0
    %1332 = vmatpush1.bf16.msra.mxu0 0
    %1333 = vmatprep.subr.bf16.mxu0 0
    %1334 = vmatpush1.bf16.msra.mxu0 0
    %1335 = vmatprep.subr.bf16.mxu0 0
    %1336 = vmatpush1.bf16.msra.mxu0 0
    %1337 = vmatprep.mubr.bf16.mxu0 0
    %1338 = vmatmul.mubr.bf16.gmra.mrb[0].mxu0 %v1233
    %v1339 = vpop.f32.mrb[0].mxu0
    %v1340 = vadd.f32 %v1255, %v1339
    %v1341 = vpop.f32.mrb[0].mxu0
    %v1342 = vpop.f32.mrb[0].mxu0
    %v1343 = vpop.f32.mrb[0].mxu0
    %1344 = vdwg.mxu0
    %vm1345 = vcmask 64512
    %1346 = vst.msk [vmem:[#allocation8] sm:$0xff] %vm1345, %v1340
    // Predicated region
    $region50: #{coordinate_generator_forward.1} parent=1 // pred_check
      _
    $region51: #{coordinate_generator_forward.1} parent=1 // pred_check_branch
      %1348 = sbr.rel (0) target = $region53
    $region52: #{coordinate_generator_forward.1} parent=1 // pred_region
      %s1350 = ssub.s32 128, 128
      %1351 = vsyncadd [#allocation4], %s1350
      %s1353 = sshll.u32 [#allocation8], 4
      %s1354 = int_to_ptr.vmem [resolvable:$true] %s1353
      %1356 = dma.vmem_to_hbm [thread:$0]  %s1354, 128, %s9, [#allocation4]
    $region53: #{coordinate_generator_forward.1} parent=1 // pred_fallthru
      _
    // Predicated region
    $region54: #{coordinate_generator_forward.1} parent=1 // pred_check
      _
    $region55: #{coordinate_generator_forward.1} parent=1 // pred_check_branch
      %1358 = sbr.rel (0) target = $region57
    $region56: #{coordinate_generator_forward.1} parent=1 // pred_region
      %1359 = dma.done [#allocation4], 128
    $region57: #{coordinate_generator_forward.1} parent=1 // pred_fallthru
      _
    %1360 = vsyncpa [#allocation3], 1
    %1361 = vsyncpa [#allocation6], 1
    %1362 = vsyncpa [#allocation4], 1

</llo_original>
